<compile_context>
chip_gen: v7x
topology: tpu7x:2x2x1
jax: 0.10.0
libtpu: 0.0.40
codegen_flags: <defaults>
</compile_context>

<pallas_src>
import functools

import jax
import jax.numpy as jnp
from jax.experimental import pallas as pl
from jax.experimental.pallas import tpu as pltpu


# --------------------------------------------------------------------------- #
# Kernel
# --------------------------------------------------------------------------- #
def _film_kernel(x_ref, cond_ref, w_ref, b_ref, o_ref, *,
                 cond_resident, batch_axis, tm):
    """Compute one (tm, tn) output tile of FiLM.

    x_ref:    (tm, tn)             inputs tile
    cond_ref: (tm, d_cond)         per-tile cond rows,   if not cond_resident
              (B_pad, d_cond)      full resident cond,   if cond_resident
    w_ref:    (d_cond, 2*tn)       fused weights  [Ws_tile | Wb_tile]
    b_ref:    (1, 2*tn)            fused biases   [bs_tile | bb_tile]
    """
    tn = o_ref.shape[-1]
    if cond_resident:
        i = pl.program_id(batch_axis)
        row0 = pl.multiple_of(i * tm, tm)
        cond = cond_ref[pl.ds(row0, tm), :]
    else:
        cond = cond_ref[...]
    # One wide MXU matmul for gamma and beta together, f32 accumulation.
    y = jnp.dot(cond, w_ref[...], preferred_element_type=jnp.float32)
    y = y + b_ref[...].astype(jnp.float32)
    gamma = y[:, :tn]
    beta = y[:, tn:]
    o_ref[...] = (gamma * x_ref[...].astype(jnp.float32) + beta).astype(o_ref.dtype)


# --------------------------------------------------------------------------- #
# Helpers
# --------------------------------------------------------------------------- #
def _round_up(x, q):
    return ((x + q - 1) // q) * q


def _vmem_capacity_bytes():
    """Physical VMEM per TensorCore; conservative v7x default if unknown."""
    try:
        info = pltpu.get_tpu_info()
        cap = getattr(info, "vmem_capacity_bytes", None)
        if cap:
            return int(cap)
    except Exception:
        pass
    return 64 * 1024 * 1024  # v7x per-TC VMEM (smallest of v5e/v6e/v7x)


def _select_tiles(B, d_out, d_cond, x_dtype, c_dtype, w_dtype,
                  tm_target, tn_target, tn_fixed=False):
    """Pick (tm, tn), VMEM limit and cond-residency for the pallas_call."""
    cap = _vmem_capacity_bytes()
    budget = int(cap * 3 // 4)           # ~48 MiB on v7x, ~96 MiB on v5e/v6e

    x_isz = jnp.dtype(x_dtype).itemsize
    c_isz = jnp.dtype(c_dtype).itemsize
    w_isz = jnp.dtype(w_dtype).itemsize

    # dtype-aware sublane quantum: 8 (f32), 16 (bf16), 32 (int8/fp8).
    qm = max(8, 32 // max(1, x_isz))

    tm = max(qm, _round_up(min(tm_target, _round_up(B, qm)), qm))
    if tn_fixed:
        tn = tn_target
    else:
        tn = max(128, _round_up(min(tn_target, _round_up(d_out, 128)), 128))

    def est(tm_, tn_, cond_res, b_res):
        v = 2 * tm_ * tn_ * x_isz * 2                 # in + out, double-buffered
        v += 2 * (d_cond + 1) * (2 * tn_) * w_isz     # fused W + bias, double-buffered
        v += (b_res * d_cond * c_isz) if cond_res else (2 * tm_ * d_cond * c_isz)
        v += tm_ * (2 * tn_) * 4 + tm_ * tn_ * 4      # f32 intermediates (y, gamma*x)
        return v

    # Shrink tiles until the footprint fits the per-generation budget.
    while est(tm, tn, False, 0) > budget:
        if not tn_fixed and tn > 256:
            tn = _round_up(tn // 2, 128)
        elif tm > qm:
            tm = _round_up(max(tm // 2, qm), qm)
        elif not tn_fixed and tn > 128:
            tn = 128
        else:
            break

    b_pad = _round_up(B, tm)
    cond_resident = (b_pad * d_cond * c_isz <= min(4 << 20, budget // 8)
                     and est(tm, tn, True, b_pad) <= budget)
    return tm, tn, int(budget), cond_resident


def fuse_film_params(w_scale, b_scale, w_shift, b_shift, tn):
    """One-time param prep: interleave [Ws_tile | Wb_tile] per d_out tile of
    width `tn`, padding d_out up to a multiple of tn. Call once at parameter
    prep time and pass the result via film_conditioning(..., fused=(w,b,tn)).
    """
    d_cond, d_out = w_scale.shape
    b_scale = jnp.reshape(b_scale, (1, d_out))
    b_shift = jnp.reshape(b_shift, (1, d_out))
    d_out_pad = _round_up(d_out, tn)
    pad = d_out_pad - d_out
    if pad:
        w_scale = jnp.pad(w_scale, ((0, 0), (0, pad)))
        w_shift = jnp.pad(w_shift, ((0, 0), (0, pad)))
        b_scale = jnp.pad(b_scale, ((0, 0), (0, pad)))
        b_shift = jnp.pad(b_shift, ((0, 0), (0, pad)))
    n_t = d_out_pad // tn
    w_cat = jnp.concatenate(
        [w_scale.reshape(d_cond, n_t, tn), w_shift.reshape(d_cond, n_t, tn)],
        axis=-1).reshape(d_cond, 2 * d_out_pad)
    b_cat = jnp.concatenate(
        [b_scale.reshape(1, n_t, tn), b_shift.reshape(1, n_t, tn)],
        axis=-1).reshape(1, 2 * d_out_pad)
    return w_cat, b_cat


def _film_reference(inputs, cond, w_scale, b_scale, w_shift, b_shift):
    # f32 accumulation to match the kernel exactly (also for bf16 inputs).
    gamma = jnp.dot(cond, w_scale, preferred_element_type=jnp.float32)
    gamma = gamma + jnp.reshape(b_scale, (1, -1)).astype(jnp.float32)
    beta = jnp.dot(cond, w_shift, preferred_element_type=jnp.float32)
    beta = beta + jnp.reshape(b_shift, (1, -1)).astype(jnp.float32)
    return (gamma * inputs.astype(jnp.float32) + beta).astype(inputs.dtype)


# --------------------------------------------------------------------------- #
# Public entry point
# --------------------------------------------------------------------------- #
def film_conditioning(inputs, cond_vector, w_scale=None, b_scale=None,
                      w_shift=None, b_shift=None, *, tm=None, tn=None,
                      fused=None, use_pallas=None):
    """FiLM: (cond @ Ws + bs) * inputs + (cond @ Wb + bb).

    inputs:            [B, d_out]
    cond_vector:       [B, d_cond]  (or None -> returns inputs, as in PyTorch)
    w_scale / w_shift: [d_cond, d_out]   (W^T of nn.Linear)
    b_scale / b_shift: [1, d_out] or [d_out]
    fused:             optional (w_cat, b_cat, tn) from fuse_film_params(),
                       hoisting the per-call weight interleave out of the path.
    """
    if cond_vector is None:
        return inputs

    B, d_out = inputs.shape
    _, d_cond = cond_vector.shape

    if use_pallas is None:
        # Tiny problems: a pallas_call is pure launch/DMA-setup overhead.
        use_pallas = inputs.size >= (1 << 16)
    if not use_pallas:
        return _film_reference(inputs, cond_vector, w_scale, b_scale,
                               w_shift, b_shift)

    # ---- tiling + VMEM budget ----------------------------------------------
    if fused is not None:
        w_cat, b_cat, tn_fused = fused
        tn_target, tn_fixed = tn_fused, True
        w_dtype = w_cat.dtype
    else:
        tn_target, tn_fixed = (tn if tn is not None else 1024), False
        w_dtype = w_scale.dtype
    tm_target = tm if tm is not None else 512

    tm_sel, tn_sel, vmem_limit, cond_resident = _select_tiles(
        B, d_out, d_cond, inputs.dtype, cond_vector.dtype, w_dtype,
        tm_target, tn_target, tn_fixed=tn_fixed)

    if fused is None:
        # Prefer prefusing once at param-prep time (fuse_film_params) so this
        # concat does not run on every forward call.
        w_cat, b_cat = fuse_film_params(w_scale, b_scale, w_shift, b_shift, tn_sel)

    d_out_pad = w_cat.shape[1] // 2
    n_t = d_out_pad // tn_sel
    n_b = pl.cdiv(B, tm_sel)

    # ---- cond: VMEM-resident (single DMA) when small, else per-tile ---------
    if cond_resident:
        b_pad = _round_up(B, tm_sel)
        cond_in = (cond_vector if b_pad == B
                   else jnp.pad(cond_vector, ((0, b_pad - B), (0, 0))))
        cond_block = (b_pad, d_cond)
    else:
        cond_in = cond_vector
        cond_block = (tm_sel, d_cond)

    # ---- grid ordering: d_out outer (weights resident over the batch sweep);
    #      batch outer when d_out fits one tile so megacore still splits ------
    if n_t >= 2 or n_b == 1:
        grid = (n_t, n_b)
        batch_axis = 1
        x_map = lambda j, i: (i, j)
        c_map = (lambda j, i: (0, 0)) if cond_resident else (lambda j, i: (i, 0))
        w_map = lambda j, i: (0, j)
    else:
        grid = (n_b, n_t)
        batch_axis = 0
        x_map = lambda i, j: (i, j)
        c_map = (lambda i, j: (0, 0)) if cond_resident else (lambda i, j: (i, 0))
        w_map = lambda i, j: (0, j)

    itemsize = jnp.dtype(inputs.dtype).itemsize
    cost = pl.CostEstimate(
        flops=2 * B * d_cond * (2 * d_out) + 3 * B * d_out,
        transcendentals=0,
        bytes_accessed=(2 * B * d_out * itemsize
                        + cond_in.size * jnp.dtype(cond_in.dtype).itemsize
                        + (w_cat.size + b_cat.size) * jnp.dtype(w_cat.dtype).itemsize),
    )

    kernel = functools.partial(_film_kernel, cond_resident=cond_resident,
                               batch_axis=batch_axis, tm=tm_sel)

    return pl.pallas_call(
        kernel,
        out_shape=jax.ShapeDtypeStruct((B, d_out), inputs.dtype),
        grid_spec=pltpu.PrefetchScalarGridSpec(
            num_scalar_prefetch=0,
            grid=grid,
            in_specs=[
                pl.BlockSpec((tm_sel, tn_sel), x_map),        # inputs
                pl.BlockSpec(cond_block, c_map),              # cond
                pl.BlockSpec((d_cond, 2 * tn_sel), w_map),    # fused W
                pl.BlockSpec((1, 2 * tn_sel), w_map),         # fused b
            ],
            out_specs=pl.BlockSpec((tm_sel, tn_sel), x_map),
        ),
        compiler_params=pltpu.CompilerParams(
            dimension_semantics=("parallel", "parallel"),
            vmem_limit_bytes=vmem_limit,
        ),
        cost_estimate=cost,
    )(inputs, cond_in, w_cat, b_cat)


# --------------------------------------------------------------------------- #
# Demo / self-test
# --------------------------------------------------------------------------- #
if __name__ == "__main__":
    key = jax.random.PRNGKey(0)
    (k_x, k_c, k_ws, k_bs, k_wb, k_bb,
     k_x2, k_c2, k_ws2, k_bs2, k_wb2, k_bb2) = jax.random.split(key, 12)

    # ---- primary small shapes ------------------------------------------------
    B, d_cond, d_out = 64, 32, 256
    inputs = jax.random.normal(k_x, (B, d_out), dtype=jnp.float32)
    cond = jax.random.normal(k_c, (B, d_cond), dtype=jnp.float32)

    lim = 1.0 / jnp.sqrt(d_cond)
    w_scale = jax.random.uniform(k_ws, (d_cond, d_out), jnp.float32, -lim, lim)
    b_scale = jax.random.uniform(k_bs, (1, d_out), jnp.float32, -lim, lim)
    w_shift = jax.random.uniform(k_wb, (d_cond, d_out), jnp.float32, -lim, lim)
    b_shift = jax.random.uniform(k_bb, (1, d_out), jnp.float32, -lim, lim)

    expected = _film_reference(inputs, cond, w_scale, b_scale, w_shift, b_shift)

    # 1) auto tiling (single-tile grid at this size), Pallas path forced.
    out = film_conditioning(inputs, cond, w_scale, b_scale, w_shift, b_shift,
                            use_pallas=True)
    out = jax.block_until_ready(out)
    assert out.shape == (B, d_out)
    assert jnp.allclose(out, expected, atol=1e-5, rtol=1e-5)

    # 2) small tiles -> real 2x2 grid, per-tile weight interleave exercised.
    out_small = film_conditioning(inputs, cond, w_scale, b_scale, w_shift, b_shift,
                                  tm=32, tn=128, use_pallas=True)
    jax.block_until_ready(out_small)
    assert jnp.allclose(out_small, expected, atol=1e-5, rtol=1e-5)

    # 3) prefused params (weight interleave hoisted out of the per-call path).
    w_cat, b_cat = fuse_film_params(w_scale, b_scale, w_shift, b_shift, tn=128)
    out_fused = film_conditioning(inputs, cond, w_scale, b_scale, w_shift, b_shift,
                                  tm=32, fused=(w_cat, b_cat, 128), use_pallas=True)
    jax.block_until_ready(out_fused)
    assert jnp.allclose(out_fused, expected, atol=1e-5, rtol=1e-5)

    # 4) non-divisible B / d_out -> cdiv grid + padded fused weights.
    B2, d_cond2, d_out2 = 40, 24, 320
    x2 = jax.random.normal(k_x2, (B2, d_out2), dtype=jnp.float32)
    c2 = jax.random.normal(k_c2, (B2, d_cond2), dtype=jnp.float32)
    lim2 = 1.0 / jnp.sqrt(d_cond2)
    w_s2 = jax.random.uniform(k_ws2, (d_cond2, d_out2), jnp.float32, -lim2, lim2)
    b_s2 = jax.random.uniform(k_bs2, (1, d_out2), jnp.float32, -lim2, lim2)
    w_h2 = jax.random.uniform(k_wb2, (d_cond2, d_out2), jnp.float32, -lim2, lim2)
    b_h2 = jax.random.uniform(k_bb2, (1, d_out2), jnp.float32, -lim2, lim2)
    expected2 = _film_reference(x2, c2, w_s2, b_s2, w_h2, b_h2)
    out2 = film_conditioning(x2, c2, w_s2, b_s2, w_h2, b_h2,
                             tm=32, tn=128, use_pallas=True)
    jax.block_until_ready(out2)
    assert out2.shape == (B2, d_out2)
    assert jnp.allclose(out2, expected2, atol=1e-5, rtol=1e-5)

    # 5) cond_vector=None path (pure passthrough, as in the PyTorch module).
    assert jnp.array_equal(
        film_conditioning(inputs, None, w_scale, b_scale, w_shift, b_shift), inputs)

    print("KERNEL_OK")
</pallas_src>

<mosaic_0001>
module attributes {stable_mosaic.version = 11 : i64} {
  func.func @_film_kernel(%arg0: i32, %arg1: i32, %arg2: memref<64x256xf32, #tpu.memory_space<vmem>>, %arg3: memref<64x32xf32, #tpu.memory_space<vmem>>, %arg4: memref<32x512xf32, #tpu.memory_space<vmem>>, %arg5: memref<1x512xf32, #tpu.memory_space<vmem>>, %arg6: memref<64x256xf32, #tpu.memory_space<vmem>>) attributes {dimension_semantics = [#tpu.dimension_semantics<parallel>, #tpu.dimension_semantics<parallel>], iteration_bounds = array<i64: 1, 1>, scalar_prefetch = 0 : i64, scratch_operands = 0 : i64, tpu.core_type = #tpu.core_type<tc>, window_params = [{transform_indices = @transform_0, window_bounds = array<i64: 64, 256>}, {pipeline_mode = #tpu.pipeline_mode<synchronous>, transform_indices = @transform_1, window_bounds = array<i64: 64, 32>}, {transform_indices = @transform_2, window_bounds = array<i64: 32, 512>}, {transform_indices = @transform_3, window_bounds = array<i64: 1, 512>}, {transform_indices = @transform_4, window_bounds = array<i64: 64, 256>}]} {
    %c64_i32 = arith.constant 64 : i32
    %0 = arith.muli %arg1, %c64_i32 : i32
    %1 = tpu.assume_multiple %0, 64 : i32
    %2 = arith.index_cast %1 : i32 to index
    %c0 = arith.constant 0 : index
    %3 = vector.load %arg3[%2, %c0] : memref<64x32xf32, #tpu.memory_space<vmem>>, vector<64x32xf32>
    %c0_0 = arith.constant 0 : index
    %c0_1 = arith.constant 0 : index
    %4 = vector.load %arg4[%c0_0, %c0_1] : memref<32x512xf32, #tpu.memory_space<vmem>>, vector<32x512xf32>
    %cst = arith.constant dense<0.000000e+00> : vector<64x512xf32>
    %5 = tpu.matmul %3, %4, %cst {dimension_numbers = #tpu.dot_dimension_numbers<[1], [0], [0], [1], [0, 0, 1, 1], [], []>} : vector<64x32xf32>, vector<32x512xf32>, vector<64x512xf32> -> vector<64x512xf32>
    %c0_2 = arith.constant 0 : index
    %c0_3 = arith.constant 0 : index
    %6 = vector.load %arg5[%c0_2, %c0_3] : memref<1x512xf32, #tpu.memory_space<vmem>>, vector<1x512xf32>
    %7 = vector.broadcast %6 : vector<1x512xf32> to vector<64x512xf32>
    %8 = arith.addf %5, %7 : vector<64x512xf32>
    %9 = vector.extract_strided_slice %8 {offsets = [0, 0], sizes = [64, 256], strides = [1, 1]} : vector<64x512xf32> to vector<64x256xf32>
    %10 = vector.extract_strided_slice %8 {offsets = [0, 256], sizes = [64, 256], strides = [1, 1]} : vector<64x512xf32> to vector<64x256xf32>
    %c0_4 = arith.constant 0 : index
    %c0_5 = arith.constant 0 : index
    %11 = vector.load %arg2[%c0_4, %c0_5] : memref<64x256xf32, #tpu.memory_space<vmem>>, vector<64x256xf32>
    %12 = arith.mulf %9, %11 : vector<64x256xf32>
    %13 = arith.addf %12, %10 : vector<64x256xf32>
    %c0_6 = arith.constant 0 : index
    %c0_7 = arith.constant 0 : index
    %14 = vector.load %arg6[%c0_6, %c0_7] : memref<64x256xf32, #tpu.memory_space<vmem>>, vector<64x256xf32>
    tpu.vector_store %arg6[%c0_6, %c0_7], %13 {strides = array<i32>} : memref<64x256xf32, #tpu.memory_space<vmem>>, vector<64x256xf32>,
    return
  }
  func.func @transform_0(%arg0: i32, %arg1: i32) -> (i32, i32) {
    %c0_i32 = arith.constant 0 : i32
    return %arg1, %arg0 : i32, i32
  }
  func.func @transform_1(%arg0: i32, %arg1: i32) -> (i32, i32) {
    %c0_i32 = arith.constant 0 : i32
    %c0_i32_0 = arith.constant 0 : i32
    %c0_i32_1 = arith.constant 0 : i32
    return %c0_i32, %c0_i32_0 : i32, i32
  }
  func.func @transform_2(%arg0: i32, %arg1: i32) -> (i32, i32) {
    %c0_i32 = arith.constant 0 : i32
    %c0_i32_0 = arith.constant 0 : i32
    return %c0_i32, %arg0 : i32, i32
  }
  func.func @transform_3(%arg0: i32, %arg1: i32) -> (i32, i32) {
    %c0_i32 = arith.constant 0 : i32
    %c0_i32_0 = arith.constant 0 : i32
    return %c0_i32, %arg0 : i32, i32
  }
  func.func @transform_4(%arg0: i32, %arg1: i32) -> (i32, i32) {
    %c0_i32 = arith.constant 0 : i32
    return %arg1, %arg0 : i32, i32
  }
}

</mosaic_0001>

<llo_original>
// kernel: tpu_custom_call.1
$region0: #{tpu_custom_call.1}
  #allocation0 [shape = 'u32[]', space=smem, size = 0x4, offset = 0x4, fixed_abs, tag = 'smem constant byte address 0x4 - core index']
  #allocation1 [shape = 'u32[144,128]{1,0:T(1,128)}', space=vmem, size = 0x12000, scoped, tag = 'internal scratch']
  %s0 = inlined_call_operand.hbm [shape: f32[64,256], index: 0, kind: input, shape index: {}]
  %s1 = inlined_call_operand.vmem [shape: f32[64,32], index: 1, kind: input, shape index: {}]
  %s2 = inlined_call_operand.hbm [shape: f32[32,512], index: 2, kind: input, shape index: {}]
  %s3 = inlined_call_operand.vmem [shape: f32[1,512], index: 3, kind: input, shape index: {}]
  %s4 = inlined_call_operand.hbm [shape: f32[64,256], index: 4, kind: output, shape index: {}]
  %s5 = sld [smem:[#allocation0]]
  $region34: #{tpu_custom_call.1} parent=0
    _
  %s7 = ssub.s32 1, %s5
  %s8 = scalar_select 0, %s7, %s5
  $region1: #{tpu_custom_call.1} parent=0
    #allocation2 [shape = 'u8[65536]{0}', space=vmem, size = 0x10000, scoped, tag = 'input window, operand 0, single buffered']
    #allocation3 [shape = 's32[1]{0}', space=sflag, size = 0x4, scoped, tag = 'scoped memory for tpu_custom_call.1']
    #allocation4 [shape = 's32[1]{0}', space=sflag, size = 0x4, scoped, tag = 'scoped memory for tpu_custom_call.1']
    #allocation5 [shape = 'u8[65536]{0}', space=vmem, size = 0x10000, scoped, tag = 'input window, operand 2, single buffered']
    #allocation6 [shape = 's32[1]{0}', space=sflag, size = 0x4, scoped, tag = 'scoped memory for tpu_custom_call.1']
    #allocation7 [shape = 'u8[65536]{0}', space=vmem, size = 0x10000, scoped, tag = 'output window, operand 0, single buffered']
    %9 = vsyncpa [#allocation3], 0
    %10 = vsyncpa [#allocation6], 0
    %11 = vsyncpa [#allocation4], 0
    // Predicated region
    $region2: #{tpu_custom_call.1} parent=1 // pred_check
      _
    $region3: #{tpu_custom_call.1} parent=1 // pred_check_branch
      %13 = sbr.rel (0) target = $region5
    $region4: #{tpu_custom_call.1} parent=1 // pred_region
      %s15 = ssub.s32 2048, 2048
      %16 = vsyncadd [#allocation3], %s15
      %s17 = sshll.u32 [#allocation2], 4
      %s18 = int_to_ptr.vmem [resolvable:$true] %s17
      %23 = dma.hbm_to_vmem [thread:$0]  %s0, 2048, %s18, [#allocation3], 256, 256, 16
    $region5: #{tpu_custom_call.1} parent=1 // pred_fallthru
      _
    // Predicated region
    $region6: #{tpu_custom_call.1} parent=1 // pred_check
      _
    $region7: #{tpu_custom_call.1} parent=1 // pred_check_branch
      %25 = sbr.rel (0) target = $region9
    $region8: #{tpu_custom_call.1} parent=1 // pred_region
      _
    $region9: #{tpu_custom_call.1} parent=1 // pred_fallthru
      _
    // Predicated region
    $region10: #{tpu_custom_call.1} parent=1 // pred_check
      _
    $region11: #{tpu_custom_call.1} parent=1 // pred_check_branch
      %27 = sbr.rel (0) target = $region13
    $region12: #{tpu_custom_call.1} parent=1 // pred_region
      %s29 = ssub.s32 2048, 2048
      %30 = vsyncadd [#allocation6], %s29
      %s31 = sshll.u32 [#allocation5], 4
      %s32 = int_to_ptr.vmem [resolvable:$true] %s31
      %37 = dma.hbm_to_vmem [thread:$0]  %s2, 2048, %s32, [#allocation6], 512, 512, 32
    $region13: #{tpu_custom_call.1} parent=1 // pred_fallthru
      _
    // Predicated region
    $region14: #{tpu_custom_call.1} parent=1 // pred_check
      _
    $region15: #{tpu_custom_call.1} parent=1 // pred_check_branch
      %39 = sbr.rel (0) target = $region17
    $region16: #{tpu_custom_call.1} parent=1 // pred_region
      _
    $region17: #{tpu_custom_call.1} parent=1 // pred_fallthru
      _
    // Predicated region
    $region18: #{tpu_custom_call.1} parent=1 // pred_check
      _
    $region19: #{tpu_custom_call.1} parent=1 // pred_check_branch
      %41 = sbr.rel (0) target = $region21
    $region20: #{tpu_custom_call.1} parent=1 // pred_region
      %42 = dma.done [#allocation3], 2048
    $region21: #{tpu_custom_call.1} parent=1 // pred_fallthru
      _
    // Predicated region
    $region22: #{tpu_custom_call.1} parent=1 // pred_check
      _
    $region23: #{tpu_custom_call.1} parent=1 // pred_check_branch
      %44 = sbr.rel (0) target = $region25
    $region24: #{tpu_custom_call.1} parent=1 // pred_region
      %45 = dma.done [#allocation6], 2048
    $region25: #{tpu_custom_call.1} parent=1 // pred_fallthru
      _
    %s46 = smul.u32 0, 64
    %s47 = scalar_lea.vmem %s1, %s46
    %v48 = vld [vmem:[%s47] sm:$0xff]
    %v49 = vld [vmem:[%s47 + $0x8] sm:$0xff]
    %v50 = vld [vmem:[%s47 + $0x10] sm:$0xff]
    %v51 = vld [vmem:[%s47 + $0x18] sm:$0xff]
    %v52 = vld [vmem:[%s47 + $0x20] sm:$0xff]
    %v53 = vld [vmem:[%s47 + $0x28] sm:$0xff]
    %v54 = vld [vmem:[%s47 + $0x30] sm:$0xff]
    %v55 = vld [vmem:[%s47 + $0x38] sm:$0xff]
    %v56 = vld [vmem:[#allocation5] sm:$0xff]
    %v57 = vld [vmem:[#allocation5 + $0x8] sm:$0xff]
    %v58 = vld [vmem:[#allocation5 + $0x10] sm:$0xff]
    %v59 = vld [vmem:[#allocation5 + $0x18] sm:$0xff]
    %v60 = vld [vmem:[#allocation5 + $0x20] sm:$0xff]
    %v61 = vld [vmem:[#allocation5 + $0x28] sm:$0xff]
    %v62 = vld [vmem:[#allocation5 + $0x30] sm:$0xff]
    %v63 = vld [vmem:[#allocation5 + $0x38] sm:$0xff]
    %v64 = vld [vmem:[#allocation5 + $0x40] sm:$0xff]
    %v65 = vld [vmem:[#allocation5 + $0x48] sm:$0xff]
    %v66 = vld [vmem:[#allocation5 + $0x50] sm:$0xff]
    %v67 = vld [vmem:[#allocation5 + $0x58] sm:$0xff]
    %v68 = vld [vmem:[#allocation5 + $0x60] sm:$0xff]
    %v69 = vld [vmem:[#allocation5 + $0x68] sm:$0xff]
    %v70 = vld [vmem:[#allocation5 + $0x70] sm:$0xff]
    %v71 = vld [vmem:[#allocation5 + $0x78] sm:$0xff]
    %v72 = vld [vmem:[%s3] sm:$0xf]
    %v74 = vlaneseq
    %v75 = vshrl.u32 %v74, 7
    %v76 = vsub.s32 0, %v75
    %v77 = vrot.slane %v72, %v76
    %v78 = vlaneseq
    %v79 = vshrl.u32 %v78, 7
    %v80 = vsub.s32 1, %v79
    %v81 = vrot.slane %v72, %v80
    %v82 = vlaneseq
    %v83 = vshrl.u32 %v82, 7
    %v84 = vsub.s32 2, %v83
    %v85 = vrot.slane %v72, %v84
    %v86 = vlaneseq
    %v87 = vshrl.u32 %v86, 7
    %v88 = vsub.s32 3, %v87
    %v89 = vrot.slane %v72, %v88
    %vm94 = vcmask 261120
    %v96 = vsel %vm94, %v48, 0
    %v99 = vsel %vm94, %v49, 0
    %v102 = vsel %vm94, %v50, 0
    %v105 = vsel %vm94, %v51, 0
    %v108 = vsel %vm94, %v52, 0
    %v111 = vsel %vm94, %v53, 0
    %v114 = vsel %vm94, %v54, 0
    %v117 = vsel %vm94, %v55, 0
    %119 = vmatprep.subr.mxu0 %v57
    %120 = vmatpush1.msra.mxu0 %v56
    %121 = vmatprep.subr.mxu0 %v61
    %122 = vmatpush1.msra.mxu0 %v60
    %123 = vmatprep.subr.mxu0 %v65
    %124 = vmatpush1.msra.mxu0 %v64
    %125 = vmatprep.subr.mxu0 %v69
    %126 = vmatpush1.msra.mxu0 %v68
    %127 = vmatprep.subr.mxu0 0.0
    %128 = vmatpush1.msra.mxu0 0.0
    %129 = vmatprep.subr.mxu0 0.0
    %130 = vmatpush1.msra.mxu0 0.0
    %131 = vmatprep.subr.mxu0 0.0
    %132 = vmatpush1.msra.mxu0 0.0
    %133 = vmatprep.subr.mxu0 0.0
    %134 = vmatpush1.msra.mxu0 0.0
    %135 = vmatprep.subr.mxu0 0.0
    %136 = vmatpush1.msra.mxu0 0.0
    %137 = vmatprep.subr.mxu0 0.0
    %138 = vmatpush1.msra.mxu0 0.0
    %139 = vmatprep.subr.mxu0 0.0
    %140 = vmatpush1.msra.mxu0 0.0
    %141 = vmatprep.subr.mxu0 0.0
    %142 = vmatpush1.msra.mxu0 0.0
    %143 = vmatprep.subr.mxu0 0.0
    %144 = vmatpush1.msra.mxu0 0.0
    %145 = vmatprep.subr.mxu0 0.0
    %146 = vmatpush1.msra.mxu0 0.0
    %147 = vmatprep.subr.mxu0 0.0
    %148 = vmatpush1.msra.mxu0 0.0
    %149 = vmatprep.subr.mxu0 0.0
    %150 = vmatpush1.msra.mxu0 0.0
    %151 = vmatprep.subr.mxu0 0.0
    %152 = vmatpush1.msra.mxu0 0.0
    %153 = vmatprep.subr.mxu0 0.0
    %154 = vmatpush1.msra.mxu0 0.0
    %155 = vmatprep.subr.mxu0 0.0
    %156 = vmatpush1.msra.mxu0 0.0
    %157 = vmatprep.subr.mxu0 0.0
    %158 = vmatpush1.msra.mxu0 0.0
    %159 = vmatprep.subr.mxu0 0.0
    %160 = vmatpush1.msra.mxu0 0.0
    %161 = vmatprep.subr.mxu0 0.0
    %162 = vmatpush1.msra.mxu0 0.0
    %163 = vmatprep.subr.mxu0 0.0
    %164 = vmatpush1.msra.mxu0 0.0
    %165 = vmatprep.subr.mxu0 0.0
    %166 = vmatpush1.msra.mxu0 0.0
    %167 = vmatprep.subr.mxu0 0.0
    %168 = vmatpush1.msra.mxu0 0.0
    %169 = vmatprep.subr.mxu0 0.0
    %170 = vmatpush1.msra.mxu0 0.0
    %171 = vmatprep.subr.mxu0 0.0
    %172 = vmatpush1.msra.mxu0 0.0
    %173 = vmatprep.subr.mxu0 0.0
    %174 = vmatpush1.msra.mxu0 0.0
    %175 = vmatprep.subr.mxu0 0.0
    %176 = vmatpush1.msra.mxu0 0.0
    %177 = vmatprep.subr.mxu0 0.0
    %178 = vmatpush1.msra.mxu0 0.0
    %179 = vmatprep.subr.mxu0 0.0
    %180 = vmatpush1.msra.mxu0 0.0
    %181 = vmatprep.subr.mxu0 0.0
    %182 = vmatpush1.msra.mxu0 0.0
    %183 = vmatprep.mubr.f32.mxu0 0.0
    %184 = vmatmul.mubr.f32.gmra.mrb[0].mxu0 %v96
    %v185 = vpop.f32.mrb[0].mxu0
    %v186 = vadd.f32 %v77, %v185
    %v187 = vpop.f32.mrb[0].mxu0
    %v188 = vadd.f32 %v81, %v187
    %189 = vmatprep.mubr.f32.mxu0 0.0
    %190 = vmatmul.mubr.f32.gmra.mrb[0].mxu0 %v99
    %v191 = vpop.f32.mrb[0].mxu0
    %v192 = vadd.f32 %v77, %v191
    %v193 = vpop.f32.mrb[0].mxu0
    %v194 = vadd.f32 %v81, %v193
    %195 = vmatprep.mubr.f32.mxu0 0.0
    %196 = vmatmul.mubr.f32.gmra.mrb[0].mxu0 %v102
    %v197 = vpop.f32.mrb[0].mxu0
    %v198 = vadd.f32 %v77, %v197
    %v199 = vpop.f32.mrb[0].mxu0
    %v200 = vadd.f32 %v81, %v199
    %201 = vmatprep.mubr.f32.mxu0 0.0
    %202 = vmatmul.mubr.f32.gmra.mrb[0].mxu0 %v105
    %v203 = vpop.f32.mrb[0].mxu0
    %v204 = vadd.f32 %v77, %v203
    %v205 = vpop.f32.mrb[0].mxu0
    %v206 = vadd.f32 %v81, %v205
    %207 = vmatprep.mubr.f32.mxu0 0.0
    %208 = vmatmul.mubr.f32.gmra.mrb[0].mxu0 %v108
    %v209 = vpop.f32.mrb[0].mxu0
    %v210 = vadd.f32 %v77, %v209
    %v211 = vpop.f32.mrb[0].mxu0
    %v212 = vadd.f32 %v81, %v211
    %213 = vmatprep.mubr.f32.mxu0 0.0
    %214 = vmatmul.mubr.f32.gmra.mrb[0].mxu0 %v111
    %v215 = vpop.f32.mrb[0].mxu0
    %v216 = vadd.f32 %v77, %v215
    %v217 = vpop.f32.mrb[0].mxu0
    %v218 = vadd.f32 %v81, %v217
    %219 = vmatprep.mubr.f32.mxu0 0.0
    %220 = vmatmul.mubr.f32.gmra.mrb[0].mxu0 %v114
    %v221 = vpop.f32.mrb[0].mxu0
    %v222 = vadd.f32 %v77, %v221
    %v223 = vpop.f32.mrb[0].mxu0
    %v224 = vadd.f32 %v81, %v223
    %225 = vmatprep.mubr.f32.mxu0 0.0
    %226 = vmatmul.mubr.f32.gmra.mrb[0].mxu0 %v117
    %v227 = vpop.f32.mrb[0].mxu0
    %v228 = vadd.f32 %v77, %v227
    %v229 = vpop.f32.mrb[0].mxu0
    %v230 = vadd.f32 %v81, %v229
    %231 = vdwg.mxu0
    %232 = vmatprep.subr.mxu0 %v59
    %233 = vmatpush1.msra.mxu0 %v58
    %234 = vmatprep.subr.mxu0 %v63
    %235 = vmatpush1.msra.mxu0 %v62
    %236 = vmatprep.subr.mxu0 %v67
    %237 = vmatpush1.msra.mxu0 %v66
    %238 = vmatprep.subr.mxu0 %v71
    %239 = vmatpush1.msra.mxu0 %v70
    %240 = vmatprep.subr.mxu0 0.0
    %241 = vmatpush1.msra.mxu0 0.0
    %242 = vmatprep.subr.mxu0 0.0
    %243 = vmatpush1.msra.mxu0 0.0
    %244 = vmatprep.subr.mxu0 0.0
    %245 = vmatpush1.msra.mxu0 0.0
    %246 = vmatprep.subr.mxu0 0.0
    %247 = vmatpush1.msra.mxu0 0.0
    %248 = vmatprep.subr.mxu0 0.0
    %249 = vmatpush1.msra.mxu0 0.0
    %250 = vmatprep.subr.mxu0 0.0
    %251 = vmatpush1.msra.mxu0 0.0
    %252 = vmatprep.subr.mxu0 0.0
    %253 = vmatpush1.msra.mxu0 0.0
    %254 = vmatprep.subr.mxu0 0.0
    %255 = vmatpush1.msra.mxu0 0.0
    %256 = vmatprep.subr.mxu0 0.0
    %257 = vmatpush1.msra.mxu0 0.0
    %258 = vmatprep.subr.mxu0 0.0
    %259 = vmatpush1.msra.mxu0 0.0
    %260 = vmatprep.subr.mxu0 0.0
    %261 = vmatpush1.msra.mxu0 0.0
    %262 = vmatprep.subr.mxu0 0.0
    %263 = vmatpush1.msra.mxu0 0.0
    %264 = vmatprep.subr.mxu0 0.0
    %265 = vmatpush1.msra.mxu0 0.0
    %266 = vmatprep.subr.mxu0 0.0
    %267 = vmatpush1.msra.mxu0 0.0
    %268 = vmatprep.subr.mxu0 0.0
    %269 = vmatpush1.msra.mxu0 0.0
    %270 = vmatprep.subr.mxu0 0.0
    %271 = vmatpush1.msra.mxu0 0.0
    %272 = vmatprep.subr.mxu0 0.0
    %273 = vmatpush1.msra.mxu0 0.0
    %274 = vmatprep.subr.mxu0 0.0
    %275 = vmatpush1.msra.mxu0 0.0
    %276 = vmatprep.subr.mxu0 0.0
    %277 = vmatpush1.msra.mxu0 0.0
    %278 = vmatprep.subr.mxu0 0.0
    %279 = vmatpush1.msra.mxu0 0.0
    %280 = vmatprep.subr.mxu0 0.0
    %281 = vmatpush1.msra.mxu0 0.0
    %282 = vmatprep.subr.mxu0 0.0
    %283 = vmatpush1.msra.mxu0 0.0
    %284 = vmatprep.subr.mxu0 0.0
    %285 = vmatpush1.msra.mxu0 0.0
    %286 = vmatprep.subr.mxu0 0.0
    %287 = vmatpush1.msra.mxu0 0.0
    %288 = vmatprep.subr.mxu0 0.0
    %289 = vmatpush1.msra.mxu0 0.0
    %290 = vmatprep.subr.mxu0 0.0
    %291 = vmatpush1.msra.mxu0 0.0
    %292 = vmatprep.subr.mxu0 0.0
    %293 = vmatpush1.msra.mxu0 0.0
    %294 = vmatprep.subr.mxu0 0.0
    %295 = vmatpush1.msra.mxu0 0.0
    %296 = vmatprep.mubr.f32.mxu0 0.0
    %297 = vmatmul.mubr.f32.gmra.mrb[0].mxu0 %v96
    %v298 = vpop.f32.mrb[0].mxu0
    %v299 = vadd.f32 %v85, %v298
    %v300 = vpop.f32.mrb[0].mxu0
    %v301 = vadd.f32 %v89, %v300
    %302 = vmatprep.mubr.f32.mxu0 0.0
    %303 = vmatmul.mubr.f32.gmra.mrb[0].mxu0 %v99
    %v304 = vpop.f32.mrb[0].mxu0
    %v305 = vadd.f32 %v85, %v304
    %v306 = vpop.f32.mrb[0].mxu0
    %v307 = vadd.f32 %v89, %v306
    %308 = vmatprep.mubr.f32.mxu0 0.0
    %309 = vmatmul.mubr.f32.gmra.mrb[0].mxu0 %v102
    %v310 = vpop.f32.mrb[0].mxu0
    %v311 = vadd.f32 %v85, %v310
    %v312 = vpop.f32.mrb[0].mxu0
    %v313 = vadd.f32 %v89, %v312
    %314 = vmatprep.mubr.f32.mxu0 0.0
    %315 = vmatmul.mubr.f32.gmra.mrb[0].mxu0 %v105
    %v316 = vpop.f32.mrb[0].mxu0
    %v317 = vadd.f32 %v85, %v316
    %v318 = vpop.f32.mrb[0].mxu0
    %v319 = vadd.f32 %v89, %v318
    %320 = vmatprep.mubr.f32.mxu0 0.0
    %321 = vmatmul.mubr.f32.gmra.mrb[0].mxu0 %v108
    %v322 = vpop.f32.mrb[0].mxu0
    %v323 = vadd.f32 %v85, %v322
    %v324 = vpop.f32.mrb[0].mxu0
    %v325 = vadd.f32 %v89, %v324
    %326 = vmatprep.mubr.f32.mxu0 0.0
    %327 = vmatmul.mubr.f32.gmra.mrb[0].mxu0 %v111
    %v328 = vpop.f32.mrb[0].mxu0
    %v329 = vadd.f32 %v85, %v328
    %v330 = vpop.f32.mrb[0].mxu0
    %v331 = vadd.f32 %v89, %v330
    %332 = vmatprep.mubr.f32.mxu0 0.0
    %333 = vmatmul.mubr.f32.gmra.mrb[0].mxu0 %v114
    %v334 = vpop.f32.mrb[0].mxu0
    %v335 = vadd.f32 %v85, %v334
    %v336 = vpop.f32.mrb[0].mxu0
    %v337 = vadd.f32 %v89, %v336
    %338 = vmatprep.mubr.f32.mxu0 0.0
    %339 = vmatmul.mubr.f32.gmra.mrb[0].mxu0 %v117
    %v340 = vpop.f32.mrb[0].mxu0
    %v341 = vadd.f32 %v85, %v340
    %v342 = vpop.f32.mrb[0].mxu0
    %v343 = vadd.f32 %v89, %v342
    %344 = vdwg.mxu0
    %v345 = vld [vmem:[#allocation2] sm:$0xff]
    %v346 = vld [vmem:[#allocation2 + $0x8] sm:$0xff]
    %v347 = vld [vmem:[#allocation2 + $0x10] sm:$0xff]
    %v348 = vld [vmem:[#allocation2 + $0x18] sm:$0xff]
    %v349 = vld [vmem:[#allocation2 + $0x20] sm:$0xff]
    %v350 = vld [vmem:[#allocation2 + $0x28] sm:$0xff]
    %v351 = vld [vmem:[#allocation2 + $0x30] sm:$0xff]
    %v352 = vld [vmem:[#allocation2 + $0x38] sm:$0xff]
    %v353 = vld [vmem:[#allocation2 + $0x40] sm:$0xff]
    %v354 = vld [vmem:[#allocation2 + $0x48] sm:$0xff]
    %v355 = vld [vmem:[#allocation2 + $0x50] sm:$0xff]
    %v356 = vld [vmem:[#allocation2 + $0x58] sm:$0xff]
    %v357 = vld [vmem:[#allocation2 + $0x60] sm:$0xff]
    %v358 = vld [vmem:[#allocation2 + $0x68] sm:$0xff]
    %v359 = vld [vmem:[#allocation2 + $0x70] sm:$0xff]
    %v360 = vld [vmem:[#allocation2 + $0x78] sm:$0xff]
    %v361 = vmul.f32 %v186, %v345
    %v362 = vmul.f32 %v188, %v346
    %v363 = vmul.f32 %v192, %v347
    %v364 = vmul.f32 %v194, %v348
    %v365 = vmul.f32 %v198, %v349
    %v366 = vmul.f32 %v200, %v350
    %v367 = vmul.f32 %v204, %v351
    %v368 = vmul.f32 %v206, %v352
    %v369 = vmul.f32 %v210, %v353
    %v370 = vmul.f32 %v212, %v354
    %v371 = vmul.f32 %v216, %v355
    %v372 = vmul.f32 %v218, %v356
    %v373 = vmul.f32 %v222, %v357
    %v374 = vmul.f32 %v224, %v358
    %v375 = vmul.f32 %v228, %v359
    %v376 = vmul.f32 %v230, %v360
    %v377 = vadd.f32 %v361, %v299
    %v378 = vadd.f32 %v362, %v301
    %v379 = vadd.f32 %v363, %v305
    %v380 = vadd.f32 %v364, %v307
    %v381 = vadd.f32 %v365, %v311
    %v382 = vadd.f32 %v366, %v313
    %v383 = vadd.f32 %v367, %v317
    %v384 = vadd.f32 %v368, %v319
    %v385 = vadd.f32 %v369, %v323
    %v386 = vadd.f32 %v370, %v325
    %v387 = vadd.f32 %v371, %v329
    %v388 = vadd.f32 %v372, %v331
    %v389 = vadd.f32 %v373, %v335
    %v390 = vadd.f32 %v374, %v337
    %v391 = vadd.f32 %v375, %v341
    %v392 = vadd.f32 %v376, %v343
    %393 = vst [vmem:[#allocation7] sm:$0xff] %v377
    %394 = vst [vmem:[#allocation7 + $0x8] sm:$0xff] %v378
    %395 = vst [vmem:[#allocation7 + $0x10] sm:$0xff] %v379
    %396 = vst [vmem:[#allocation7 + $0x18] sm:$0xff] %v380
    %397 = vst [vmem:[#allocation7 + $0x20] sm:$0xff] %v381
    %398 = vst [vmem:[#allocation7 + $0x28] sm:$0xff] %v382
    %399 = vst [vmem:[#allocation7 + $0x30] sm:$0xff] %v383
    %400 = vst [vmem:[#allocation7 + $0x38] sm:$0xff] %v384
    %401 = vst [vmem:[#allocation7 + $0x40] sm:$0xff] %v385
    %402 = vst [vmem:[#allocation7 + $0x48] sm:$0xff] %v386
    %403 = vst [vmem:[#allocation7 + $0x50] sm:$0xff] %v387
    %404 = vst [vmem:[#allocation7 + $0x58] sm:$0xff] %v388
    %405 = vst [vmem:[#allocation7 + $0x60] sm:$0xff] %v389
    %406 = vst [vmem:[#allocation7 + $0x68] sm:$0xff] %v390
    %407 = vst [vmem:[#allocation7 + $0x70] sm:$0xff] %v391
    %408 = vst [vmem:[#allocation7 + $0x78] sm:$0xff] %v392
    // Predicated region
    $region26: #{tpu_custom_call.1} parent=1 // pred_check
      _
    $region27: #{tpu_custom_call.1} parent=1 // pred_check_branch
      %410 = sbr.rel (0) target = $region29
    $region28: #{tpu_custom_call.1} parent=1 // pred_region
      %s412 = ssub.s32 2048, 2048
      %413 = vsyncadd [#allocation4], %s412
      %s414 = sshll.u32 [#allocation7], 4
      %s415 = int_to_ptr.vmem [resolvable:$true] %s414
      %420 = dma.vmem_to_hbm [thread:$0]  %s415, 2048, %s4, [#allocation4], 256, 256, 16
    $region29: #{tpu_custom_call.1} parent=1 // pred_fallthru
      _
    // Predicated region
    $region30: #{tpu_custom_call.1} parent=1 // pred_check
      _
    $region31: #{tpu_custom_call.1} parent=1 // pred_check_branch
      %422 = sbr.rel (0) target = $region33
    $region32: #{tpu_custom_call.1} parent=1 // pred_region
      %423 = dma.done [#allocation4], 2048
    $region33: #{tpu_custom_call.1} parent=1 // pred_fallthru
      _
    %424 = vsyncpa [#allocation3], 1
    %425 = vsyncpa [#allocation6], 1
    %426 = vsyncpa [#allocation4], 1

</llo_original>
